<compile_context>
chip_gen: v6e
topology: v6e:2x2x1
jax: 0.10.0
libtpu: 0.0.40
codegen_flags: <defaults>
</compile_context>

<pallas_src>
import jax
import jax.numpy as jnp
from jax.experimental import pallas as pl
from jax.experimental.pallas import tpu as pltpu


def _cdiv(a, b):
    return -(-a // b)


def _round_up(x, m):
    return ((x + m - 1) // m) * m


def _pick_dict_tile(total, want, granularity=128):
    """Largest multiple of `granularity` that divides `total`, capped at `want`."""
    t = max(granularity, (min(want, total) // granularity) * granularity)
    while total % t:
        t -= granularity
    return t


def _device_kind():
    try:
        return jax.devices()[0].device_kind.lower()
    except Exception:
        return ""


def _vmem_capacity_bytes():
    try:
        cap = int(pltpu.get_tpu_info().vmem_capacity_bytes)
        if cap > 0:
            return cap
    except Exception:
        pass
    # v7x has 64 MiB / TensorCore; v5e / v6e have 128 MiB.
    return (64 if "7" in _device_kind() else 128) * 1024 * 1024


def _default_batch_tile():
    # Roofline crossover (rows per batch tile) for bf16 weight streaming is
    # roughly: v5e ~240, v7x ~311, v6e ~656.  Default comfortably above it.
    kind = _device_kind()
    if "v5" in kind:
        return 384
    if "7" in kind:
        return 512          # also respects v7x's smaller (64 MiB) VMEM
    return 1024             # v6e and unknown


# ---------------------------------------------------------------------------
# Kernels
# ---------------------------------------------------------------------------

def _jumprelu_kernel_full(x_ref, w_enc_ref, bt_ref, w_dec_ref, b_dec_ref, o_ref):
    """Whole dictionary resident in VMEM -> one matmul pair per batch tile."""
    pre = jnp.dot(x_ref[...], w_enc_ref[...], preferred_element_type=jnp.float32)
    pre = pre + bt_ref[0:1, :]                        # + b_enc
    # JumpReLU: ReLU(pre * (pre > thr)) == where(pre > max(thr, 0), pre, 0);
    # max(thr, 0) was folded in the wrapper -> single compare + select.
    f = jnp.where(pre > bt_ref[1:2, :], pre, 0.0)
    xhat = jnp.dot(f.astype(w_dec_ref.dtype), w_dec_ref[...],
                   preferred_element_type=jnp.float32)
    o_ref[...] = (xhat + b_dec_ref[...]).astype(o_ref.dtype)


def _jumprelu_kernel_tiled(x_ref, w_enc_ref, bt_ref, w_dec_ref, b_dec_ref, o_ref,
                           acc_ref):
    """grid = (batch tiles i, dict tiles j); j is the reduction (innermost)."""
    j = pl.program_id(1)

    @pl.when(j == 0)
    def _():
        # Fold b_dec into the accumulator init (no epilogue add).
        acc_ref[...] = jnp.broadcast_to(b_dec_ref[...], acc_ref.shape)

    pre = jnp.dot(x_ref[...], w_enc_ref[...], preferred_element_type=jnp.float32)
    pre = pre + bt_ref[0:1, :]
    f = jnp.where(pre > bt_ref[1:2, :], pre, 0.0)
    acc_ref[...] += jnp.dot(f.astype(w_dec_ref.dtype), w_dec_ref[...],
                            preferred_element_type=jnp.float32)

    @pl.when(j == pl.num_programs(1) - 1)
    def _():
        o_ref[...] = acc_ref[...].astype(o_ref.dtype)


# ---------------------------------------------------------------------------
# Wrapper
# ---------------------------------------------------------------------------

def jumprelu_autoencoder_forward(x, W_enc, b_enc, W_dec, b_dec, threshold,
                                 *, tb=None, ts=None, compute_dtype=None):
    """JumpReLU SAE forward: xhat = decode(encode(x)).

    compute_dtype: optional narrower dtype (e.g. jnp.bfloat16) for the MXU
    inputs x / W_enc / W_dec.  Valid on all TPU generations (v5e's MXU is
    natively bf16); accumulation and the JumpReLU math stay in f32.
    """
    B, D = x.shape
    S = W_enc.shape[1]
    assert W_dec.shape == (S, D)
    assert S % 128 == 0, "dict_size must be a multiple of 128"

    out_dtype = x.dtype
    if compute_dtype is not None:
        x = x.astype(compute_dtype)
        W_enc = W_enc.astype(compute_dtype)
        W_dec = W_dec.astype(compute_dtype)

    w_is = jnp.dtype(W_enc.dtype).itemsize
    x_is = jnp.dtype(x.dtype).itemsize
    o_is = jnp.dtype(out_dtype).itemsize          # output stays in x's original dtype

    capacity = _vmem_capacity_bytes()
    budget = int(0.80 * capacity)

    def footprint(tb_, ts_, reduced):
        weights = 2 * 2 * ts_ * D * w_is          # W_enc + W_dec tiles, double-buffered
        io = 2 * tb_ * D * (x_is + o_is)          # x + out tiles, double-buffered
        vecs = 2 * (2 * ts_ + D) * 4              # bt + b_dec, double-buffered
        acc = tb_ * D * 4 if reduced else 0       # f32 accumulator scratch
        interm = 3 * tb_ * ts_ * 4                # pre / f / partial-dot temporaries
        return weights + io + vecs + acc + interm

    # --- batch tiling: roughly-equal tiles of multiple-of-8 rows -------------
    tb_want = tb if tb is not None else _default_batch_tile()

    def derive_tb(want):
        n = max(1, _cdiv(B, want))
        t = _round_up(_cdiv(B, n), 8)
        return n, t

    n_btiles, tb_eff = derive_tb(tb_want)

    # --- dict tiling: keep the whole dictionary resident when it fits --------
    use_full_dict = (ts is None or ts >= S) and footprint(tb_eff, S, False) <= budget
    if use_full_dict:
        ts_eff = S
    else:
        ts_eff = _pick_dict_tile(S, 512 if ts is None else ts)
        while footprint(tb_eff, ts_eff, True) > budget and tb_want > 8:
            tb_want = max(8, tb_want // 2)
            n_btiles, tb_eff = derive_tb(tb_want)
        while footprint(tb_eff, ts_eff, True) > budget and ts_eff > 128:
            ts_eff = _pick_dict_tile(S, max(128, ts_eff // 2))

    B_pad = n_btiles * tb_eff
    if B_pad != B:
        x = jnp.pad(x, ((0, B_pad - B), (0, 0)))

    # b_enc and the pre-clamped threshold packed into one [2, S] stream.
    bt = jnp.stack([b_enc.astype(jnp.float32),
                    jnp.maximum(threshold, 0.0).astype(jnp.float32)], axis=0)
    b_dec2 = b_dec.astype(jnp.float32).reshape(1, D)

    fp = footprint(tb_eff, ts_eff, not use_full_dict)
    vmem_limit = int(min(0.9 * capacity, max(32 * 1024 * 1024, int(1.5 * fp))))

    if use_full_dict:
        grid = (n_btiles,)
        kernel = _jumprelu_kernel_full
        in_specs = [
            pl.BlockSpec((tb_eff, D), lambda i: (i, 0)),       # x
            pl.BlockSpec((D, S), lambda i: (0, 0)),            # W_enc (resident)
            pl.BlockSpec((2, S), lambda i: (0, 0)),            # [b_enc; max(thr,0)]
            pl.BlockSpec((S, D), lambda i: (0, 0)),            # W_dec (resident)
            pl.BlockSpec((1, D), lambda i: (0, 0)),            # b_dec
        ]
        out_specs = pl.BlockSpec((tb_eff, D), lambda i: (i, 0))
        scratch = []
        dim_sem = ("parallel",)
    else:
        grid = (n_btiles, S // ts_eff)
        kernel = _jumprelu_kernel_tiled
        in_specs = [
            pl.BlockSpec((tb_eff, D), lambda i, j: (i, 0)),    # x
            pl.BlockSpec((D, ts_eff), lambda i, j: (0, j)),    # W_enc
            pl.BlockSpec((2, ts_eff), lambda i, j: (0, j)),    # [b_enc; max(thr,0)]
            pl.BlockSpec((ts_eff, D), lambda i, j: (j, 0)),    # W_dec
            pl.BlockSpec((1, D), lambda i, j: (0, 0)),         # b_dec
        ]
        out_specs = pl.BlockSpec((tb_eff, D), lambda i, j: (i, 0))
        scratch = [pltpu.VMEM((tb_eff, D), jnp.float32)]
        dim_sem = ("parallel", "arbitrary")

    out = pl.pallas_call(
        kernel,
        out_shape=jax.ShapeDtypeStruct((B_pad, D), out_dtype),
        grid_spec=pltpu.PrefetchScalarGridSpec(
            num_scalar_prefetch=0,
            grid=grid,
            in_specs=in_specs,
            out_specs=out_specs,
            scratch_shapes=scratch,
        ),
        compiler_params=pltpu.CompilerParams(
            dimension_semantics=dim_sem,
            vmem_limit_bytes=vmem_limit),
    )(x, W_enc, bt, W_dec, b_dec2)

    return out[:B] if B_pad != B else out


# ---------------------------------------------------------------------------
# Reference + demo
# ---------------------------------------------------------------------------

def reference_forward(x, W_enc, b_enc, W_dec, b_dec, threshold):
    pre = x @ W_enc + b_enc
    f = jnp.maximum(pre * (pre > threshold).astype(pre.dtype), 0.0)
    norm = jnp.linalg.norm(W_dec, axis=1)
    f = f * norm
    f = f / norm
    return f @ W_dec + b_dec


if __name__ == "__main__":
    # deterministic parameter init matching JumpReluAutoEncoder.__init__
    activation_dim, dict_size, batch = 128, 512, 20
    key = jax.random.PRNGKey(0)
    k_w, k_x, k_b1, k_b2, k_t = jax.random.split(key, 5)

    W_enc = jax.random.normal(k_w, (activation_dim, dict_size), jnp.float32)
    W_enc = W_enc / jnp.linalg.norm(W_enc, axis=0, keepdims=True)
    W_dec = W_enc.T                                  # clone of W_enc, transposed
    b_enc = 0.1 * jax.random.normal(k_b1, (dict_size,), jnp.float32)
    b_dec = 0.1 * jax.random.normal(k_b2, (activation_dim,), jnp.float32)
    threshold = 0.1 * jax.random.normal(k_t, (dict_size,), jnp.float32)  # mixed sign

    x = jax.random.normal(k_x, (batch, activation_dim), jnp.float32)

    ref = reference_forward(x, W_enc, b_enc, W_dec, b_dec, threshold)

    # f32 path (exact-ish); small dict -> full-dictionary fast path (1-D grid)
    out = jax.block_until_ready(
        jumprelu_autoencoder_forward(x, W_enc, b_enc, W_dec, b_dec, threshold))
    assert out.shape == (batch, activation_dim)
    assert jnp.allclose(out, ref, atol=1e-4, rtol=1e-4)

    # bf16 weights/activations path (valid on all generations), f32 accumulation
    out_bf16 = jax.block_until_ready(
        jumprelu_autoencoder_forward(x, W_enc, b_enc, W_dec, b_dec, threshold,
                                     compute_dtype=jnp.bfloat16))
    assert out_bf16.shape == (batch, activation_dim)
    assert jnp.allclose(out_bf16, ref, atol=1e-1, rtol=1e-1)

    # force the tiled (reduction) path as well, to exercise both kernels
    out_tiled = jax.block_until_ready(
        jumprelu_autoencoder_forward(x, W_enc, b_enc, W_dec, b_dec, threshold,
                                     tb=8, ts=128))
    assert jnp.allclose(out_tiled, ref, atol=1e-4, rtol=1e-4)

    print("KERNEL_OK")
</pallas_src>

<mosaic_0001>
module attributes {stable_mosaic.version = 11 : i64} {
  func.func @_jumprelu_kernel_full(%arg0: i32, %arg1: memref<24x128xf32, #tpu.memory_space<vmem>>, %arg2: memref<128x512xf32, #tpu.memory_space<vmem>>, %arg3: memref<2x512xf32, #tpu.memory_space<vmem>>, %arg4: memref<512x128xf32, #tpu.memory_space<vmem>>, %arg5: memref<1x128xf32, #tpu.memory_space<vmem>>, %arg6: memref<24x128xf32, #tpu.memory_space<vmem>>) attributes {dimension_semantics = [#tpu.dimension_semantics<parallel>], iteration_bounds = array<i64: 1>, scalar_prefetch = 0 : i64, scratch_operands = 0 : i64, tpu.core_type = #tpu.core_type<tc>, window_params = [{transform_indices = @transform_0, window_bounds = array<i64: 24, 128>}, {pipeline_mode = #tpu.pipeline_mode<synchronous>, transform_indices = @transform_1, window_bounds = array<i64: 128, 512>}, {pipeline_mode = #tpu.pipeline_mode<synchronous>, transform_indices = @transform_2, window_bounds = array<i64: 2, 512>}, {pipeline_mode = #tpu.pipeline_mode<synchronous>, transform_indices = @transform_3, window_bounds = array<i64: 512, 128>}, {pipeline_mode = #tpu.pipeline_mode<synchronous>, transform_indices = @transform_4, window_bounds = array<i64: 1, 128>}, {transform_indices = @transform_5, window_bounds = array<i64: 24, 128>}]} {
    %c0 = arith.constant 0 : index
    %c0_0 = arith.constant 0 : index
    %0 = vector.load %arg1[%c0, %c0_0] : memref<24x128xf32, #tpu.memory_space<vmem>>, vector<24x128xf32>
    %c0_1 = arith.constant 0 : index
    %c0_2 = arith.constant 0 : index
    %1 = vector.load %arg2[%c0_1, %c0_2] : memref<128x512xf32, #tpu.memory_space<vmem>>, vector<128x512xf32>
    %cst = arith.constant dense<0.000000e+00> : vector<24x512xf32>
    %2 = tpu.matmul %0, %1, %cst {dimension_numbers = #tpu.dot_dimension_numbers<[1], [0], [0], [1], [0, 0, 1, 1], [], []>} : vector<24x128xf32>, vector<128x512xf32>, vector<24x512xf32> -> vector<24x512xf32>
    %c0_3 = arith.constant 0 : index
    %c0_4 = arith.constant 0 : index
    %3 = vector.load %arg3[%c0_3, %c0_4] : memref<2x512xf32, #tpu.memory_space<vmem>>, vector<1x512xf32>
    %4 = vector.broadcast %3 : vector<1x512xf32> to vector<24x512xf32>
    %5 = arith.addf %2, %4 : vector<24x512xf32>
    %c1 = arith.constant 1 : index
    %c0_5 = arith.constant 0 : index
    %6 = vector.load %arg3[%c1, %c0_5] : memref<2x512xf32, #tpu.memory_space<vmem>>, vector<1x512xf32>
    %7 = vector.broadcast %6 : vector<1x512xf32> to vector<24x512xf32>
    %8 = arith.cmpf ogt, %5, %7 : vector<24x512xf32>
    %cst_6 = arith.constant 0.000000e+00 : f32
    %9 = vector.broadcast %cst_6 : f32 to vector<24x512xf32>
    %10 = arith.select %8, %5, %9 : vector<24x512xi1>, vector<24x512xf32>
    %c0_7 = arith.constant 0 : index
    %c0_8 = arith.constant 0 : index
    %11 = vector.load %arg4[%c0_7, %c0_8] : memref<512x128xf32, #tpu.memory_space<vmem>>, vector<512x128xf32>
    %cst_9 = arith.constant dense<0.000000e+00> : vector<24x128xf32>
    %12 = tpu.matmul %10, %11, %cst_9 {dimension_numbers = #tpu.dot_dimension_numbers<[1], [0], [0], [1], [0, 0, 1, 1], [], []>} : vector<24x512xf32>, vector<512x128xf32>, vector<24x128xf32> -> vector<24x128xf32>
    %c0_10 = arith.constant 0 : index
    %c0_11 = arith.constant 0 : index
    %13 = vector.load %arg5[%c0_10, %c0_11] : memref<1x128xf32, #tpu.memory_space<vmem>>, vector<1x128xf32>
    %14 = vector.broadcast %13 : vector<1x128xf32> to vector<24x128xf32>
    %15 = arith.addf %12, %14 : vector<24x128xf32>
    %c0_12 = arith.constant 0 : index
    %c0_13 = arith.constant 0 : index
    %16 = vector.load %arg6[%c0_12, %c0_13] : memref<24x128xf32, #tpu.memory_space<vmem>>, vector<24x128xf32>
    tpu.vector_store %arg6[%c0_12, %c0_13], %15 {strides = array<i32>} : memref<24x128xf32, #tpu.memory_space<vmem>>, vector<24x128xf32>,
    return
  }
  func.func @transform_0(%arg0: i32) -> (i32, i32) {
    %c0_i32 = arith.constant 0 : i32
    %c0_i32_0 = arith.constant 0 : i32
    return %arg0, %c0_i32 : i32, i32
  }
  func.func @transform_1(%arg0: i32) -> (i32, i32) {
    %c0_i32 = arith.constant 0 : i32
    %c0_i32_0 = arith.constant 0 : i32
    %c0_i32_1 = arith.constant 0 : i32
    return %c0_i32, %c0_i32_0 : i32, i32
  }
  func.func @transform_2(%arg0: i32) -> (i32, i32) {
    %c0_i32 = arith.constant 0 : i32
    %c0_i32_0 = arith.constant 0 : i32
    %c0_i32_1 = arith.constant 0 : i32
    return %c0_i32, %c0_i32_0 : i32, i32
  }
  func.func @transform_3(%arg0: i32) -> (i32, i32) {
    %c0_i32 = arith.constant 0 : i32
    %c0_i32_0 = arith.constant 0 : i32
    %c0_i32_1 = arith.constant 0 : i32
    return %c0_i32, %c0_i32_0 : i32, i32
  }
  func.func @transform_4(%arg0: i32) -> (i32, i32) {
    %c0_i32 = arith.constant 0 : i32
    %c0_i32_0 = arith.constant 0 : i32
    %c0_i32_1 = arith.constant 0 : i32
    return %c0_i32, %c0_i32_0 : i32, i32
  }
  func.func @transform_5(%arg0: i32) -> (i32, i32) {
    %c0_i32 = arith.constant 0 : i32
    %c0_i32_0 = arith.constant 0 : i32
    return %arg0, %c0_i32 : i32, i32
  }
}

</mosaic_0001>

<llo_original>
// kernel: tpu_custom_call.1
$region0: #{tpu_custom_call.1}
  #allocation0 [shape = 'u32[]', space=smem, size = 0x4, offset = 0x4, fixed_abs, tag = 'smem constant byte address 0x4 - core index']
  #allocation1 [shape = 'u32[144,128]{1,0:T(1,128)}', space=vmem, size = 0x12000, scoped, tag = 'internal scratch']
  %s0 = inlined_call_operand.hbm [shape: f32[24,128], index: 0, kind: input, shape index: {}]
  %s1 = inlined_call_operand.hbm [shape: f32[128,512], index: 1, kind: input, shape index: {}]
  %s2 = inlined_call_operand.hbm [shape: f32[2,512], index: 2, kind: input, shape index: {}]
  %s3 = inlined_call_operand.hbm [shape: f32[512,128], index: 3, kind: input, shape index: {}]
  %s4 = inlined_call_operand.vmem [shape: f32[1,128], index: 4, kind: input, shape index: {}]
  %s5 = inlined_call_operand.hbm [shape: f32[24,128], index: 5, kind: output, shape index: {}]
  %s6 = sld [smem:[#allocation0]]
  $region46: #{tpu_custom_call.1} parent=0
    _
  %s8 = ssub.s32 1, %s6
  %s9 = scalar_select 0, %s8, %s6
  $region1: #{tpu_custom_call.1} parent=0
    #allocation2 [shape = 'u8[12288]{0}', space=vmem, size = 0x3000, scoped, tag = 'input window, operand 0, single buffered']
    #allocation3 [shape = 's32[1]{0}', space=sflag, size = 0x4, scoped, tag = 'scoped memory for tpu_custom_call.1']
    #allocation4 [shape = 's32[1]{0}', space=sflag, size = 0x4, scoped, tag = 'scoped memory for tpu_custom_call.1']
    #allocation5 [shape = 'u8[262144]{0}', space=vmem, size = 0x40000, scoped, tag = 'input window, operand 1, single buffered']
    #allocation6 [shape = 's32[1]{0}', space=sflag, size = 0x4, scoped, tag = 'scoped memory for tpu_custom_call.1']
    #allocation7 [shape = 'u8[4096]{0}', space=vmem, size = 0x1000, scoped, tag = 'input window, operand 2, single buffered']
    #allocation8 [shape = 'u8[262144]{0}', space=vmem, size = 0x40000, scoped, tag = 'input window, operand 3, single buffered']
    #allocation9 [shape = 's32[1]{0}', space=sflag, size = 0x4, scoped, tag = 'scoped memory for tpu_custom_call.1']
    #allocation10 [shape = 'u8[12288]{0}', space=vmem, size = 0x3000, scoped, tag = 'output window, operand 0, single buffered']
    %10 = vsyncpa [#allocation3], 0
    %11 = vsyncpa [#allocation6], 0
    %12 = vsyncpa [#allocation9], 0
    %13 = vsyncpa [#allocation4], 0
    // Predicated region
    $region2: #{tpu_custom_call.1} parent=1 // pred_check
      _
    $region3: #{tpu_custom_call.1} parent=1 // pred_check_branch
      %15 = sbr.rel (0) target = $region5
    $region4: #{tpu_custom_call.1} parent=1 // pred_region
      %s17 = ssub.s32 384, 384
      %18 = vsyncadd [#allocation3], %s17
      %s19 = sshll.u32 [#allocation2], 4
      %s20 = int_to_ptr.vmem [resolvable:$true] %s19
      %25 = dma.hbm_to_vmem [thread:$0]  %s0, 384, %s20, [#allocation3], 128, 128, 8
    $region5: #{tpu_custom_call.1} parent=1 // pred_fallthru
      _
    // Predicated region
    $region6: #{tpu_custom_call.1} parent=1 // pred_check
      _
    $region7: #{tpu_custom_call.1} parent=1 // pred_check_branch
      %27 = sbr.rel (0) target = $region9
    $region8: #{tpu_custom_call.1} parent=1 // pred_region
      %s29 = ssub.s32 8192, 8192
      %30 = vsyncadd [#allocation6], %s29
      %s31 = sshll.u32 [#allocation5], 4
      %s32 = int_to_ptr.vmem [resolvable:$true] %s31
      %37 = dma.hbm_to_vmem [thread:$0]  %s1, 8192, %s32, [#allocation6], 512, 512, 32
    $region9: #{tpu_custom_call.1} parent=1 // pred_fallthru
      _
    // Predicated region
    $region10: #{tpu_custom_call.1} parent=1 // pred_check
      _
    $region11: #{tpu_custom_call.1} parent=1 // pred_check_branch
      %39 = sbr.rel (0) target = $region13
    $region12: #{tpu_custom_call.1} parent=1 // pred_region
      %s41 = ssub.s32 128, 128
      %42 = vsyncadd [#allocation6], %s41
      %s44 = sshll.u32 [#allocation7], 4
      %s45 = int_to_ptr.vmem [resolvable:$true] %s44
      %47 = dma.hbm_to_vmem [thread:$0]  %s2, 128, %s45, [#allocation6]
    $region13: #{tpu_custom_call.1} parent=1 // pred_fallthru
      _
    // Predicated region
    $region14: #{tpu_custom_call.1} parent=1 // pred_check
      _
    $region15: #{tpu_custom_call.1} parent=1 // pred_check_branch
      %49 = sbr.rel (0) target = $region17
    $region16: #{tpu_custom_call.1} parent=1 // pred_region
      %s51 = ssub.s32 8192, 8192
      %52 = vsyncadd [#allocation9], %s51
      %s53 = sshll.u32 [#allocation8], 4
      %s54 = int_to_ptr.vmem [resolvable:$true] %s53
      %59 = dma.hbm_to_vmem [thread:$0]  %s3, 8192, %s54, [#allocation9], 128, 128, 8
    $region17: #{tpu_custom_call.1} parent=1 // pred_fallthru
      _
    // Predicated region
    $region18: #{tpu_custom_call.1} parent=1 // pred_check
      _
    $region19: #{tpu_custom_call.1} parent=1 // pred_check_branch
      %61 = sbr.rel (0) target = $region21
    $region20: #{tpu_custom_call.1} parent=1 // pred_region
      _
    $region21: #{tpu_custom_call.1} parent=1 // pred_fallthru
      _
    // Predicated region
    $region22: #{tpu_custom_call.1} parent=1 // pred_check
      _
    $region23: #{tpu_custom_call.1} parent=1 // pred_check_branch
      %63 = sbr.rel (0) target = $region25
    $region24: #{tpu_custom_call.1} parent=1 // pred_region
      %64 = dma.done [#allocation3], 384
    $region25: #{tpu_custom_call.1} parent=1 // pred_fallthru
      _
    // Predicated region
    $region26: #{tpu_custom_call.1} parent=1 // pred_check
      _
    $region27: #{tpu_custom_call.1} parent=1 // pred_check_branch
      %66 = sbr.rel (0) target = $region29
    $region28: #{tpu_custom_call.1} parent=1 // pred_region
      %67 = dma.done [#allocation6], 8192
    $region29: #{tpu_custom_call.1} parent=1 // pred_fallthru
      _
    // Predicated region
    $region30: #{tpu_custom_call.1} parent=1 // pred_check
      _
    $region31: #{tpu_custom_call.1} parent=1 // pred_check_branch
      %69 = sbr.rel (0) target = $region33
    $region32: #{tpu_custom_call.1} parent=1 // pred_region
      %70 = dma.done [#allocation6], 128
    $region33: #{tpu_custom_call.1} parent=1 // pred_fallthru
      _
    // Predicated region
    $region34: #{tpu_custom_call.1} parent=1 // pred_check
      _
    $region35: #{tpu_custom_call.1} parent=1 // pred_check_branch
      %72 = sbr.rel (0) target = $region37
    $region36: #{tpu_custom_call.1} parent=1 // pred_region
      %73 = dma.done [#allocation9], 8192
    $region37: #{tpu_custom_call.1} parent=1 // pred_fallthru
      _
    %v74 = vld [vmem:[#allocation2] sm:$0xff]
    %v75 = vld [vmem:[#allocation2 + $0x8] sm:$0xff]
    %v76 = vld [vmem:[#allocation2 + $0x10] sm:$0xff]
    %v77 = vld [vmem:[#allocation5] sm:$0xff]
    %v78 = vld [vmem:[#allocation5 + $0x8] sm:$0xff]
    %v79 = vld [vmem:[#allocation5 + $0x10] sm:$0xff]
    %v80 = vld [vmem:[#allocation5 + $0x18] sm:$0xff]
    %v81 = vld [vmem:[#allocation5 + $0x20] sm:$0xff]
    %v82 = vld [vmem:[#allocation5 + $0x28] sm:$0xff]
    %v83 = vld [vmem:[#allocation5 + $0x30] sm:$0xff]
    %v84 = vld [vmem:[#allocation5 + $0x38] sm:$0xff]
    %v85 = vld [vmem:[#allocation5 + $0x40] sm:$0xff]
    %v86 = vld [vmem:[#allocation5 + $0x48] sm:$0xff]
    %v87 = vld [vmem:[#allocation5 + $0x50] sm:$0xff]
    %v88 = vld [vmem:[#allocation5 + $0x58] sm:$0xff]
    %v89 = vld [vmem:[#allocation5 + $0x60] sm:$0xff]
    %v90 = vld [vmem:[#allocation5 + $0x68] sm:$0xff]
    %v91 = vld [vmem:[#allocation5 + $0x70] sm:$0xff]
    %v92 = vld [vmem:[#allocation5 + $0x78] sm:$0xff]
    %v93 = vld [vmem:[#allocation5 + $0x80] sm:$0xff]
    %v94 = vld [vmem:[#allocation5 + $0x88] sm:$0xff]
    %v95 = vld [vmem:[#allocation5 + $0x90] sm:$0xff]
    %v96 = vld [vmem:[#allocation5 + $0x98] sm:$0xff]
    %v97 = vld [vmem:[#allocation5 + $0xa0] sm:$0xff]
    %v98 = vld [vmem:[#allocation5 + $0xa8] sm:$0xff]
    %v99 = vld [vmem:[#allocation5 + $0xb0] sm:$0xff]
    %v100 = vld [vmem:[#allocation5 + $0xb8] sm:$0xff]
    %v101 = vld [vmem:[#allocation5 + $0xc0] sm:$0xff]
    %v102 = vld [vmem:[#allocation5 + $0xc8] sm:$0xff]
    %v103 = vld [vmem:[#allocation5 + $0xd0] sm:$0xff]
    %v104 = vld [vmem:[#allocation5 + $0xd8] sm:$0xff]
    %v105 = vld [vmem:[#allocation5 + $0xe0] sm:$0xff]
    %v106 = vld [vmem:[#allocation5 + $0xe8] sm:$0xff]
    %v107 = vld [vmem:[#allocation5 + $0xf0] sm:$0xff]
    %v108 = vld [vmem:[#allocation5 + $0xf8] sm:$0xff]
    %v109 = vld [vmem:[#allocation5 + $0x100] sm:$0xff]
    %v110 = vld [vmem:[#allocation5 + $0x108] sm:$0xff]
    %v111 = vld [vmem:[#allocation5 + $0x110] sm:$0xff]
    %v112 = vld [vmem:[#allocation5 + $0x118] sm:$0xff]
    %v113 = vld [vmem:[#allocation5 + $0x120] sm:$0xff]
    %v114 = vld [vmem:[#allocation5 + $0x128] sm:$0xff]
    %v115 = vld [vmem:[#allocation5 + $0x130] sm:$0xff]
    %v116 = vld [vmem:[#allocation5 + $0x138] sm:$0xff]
    %v117 = vld [vmem:[#allocation5 + $0x140] sm:$0xff]
    %v118 = vld [vmem:[#allocation5 + $0x148] sm:$0xff]
    %v119 = vld [vmem:[#allocation5 + $0x150] sm:$0xff]
    %v120 = vld [vmem:[#allocation5 + $0x158] sm:$0xff]
    %v121 = vld [vmem:[#allocation5 + $0x160] sm:$0xff]
    %v122 = vld [vmem:[#allocation5 + $0x168] sm:$0xff]
    %v123 = vld [vmem:[#allocation5 + $0x170] sm:$0xff]
    %v124 = vld [vmem:[#allocation5 + $0x178] sm:$0xff]
    %v125 = vld [vmem:[#allocation5 + $0x180] sm:$0xff]
    %v126 = vld [vmem:[#allocation5 + $0x188] sm:$0xff]
    %v127 = vld [vmem:[#allocation5 + $0x190] sm:$0xff]
    %v128 = vld [vmem:[#allocation5 + $0x198] sm:$0xff]
    %v129 = vld [vmem:[#allocation5 + $0x1a0] sm:$0xff]
    %v130 = vld [vmem:[#allocation5 + $0x1a8] sm:$0xff]
    %v131 = vld [vmem:[#allocation5 + $0x1b0] sm:$0xff]
    %v132 = vld [vmem:[#allocation5 + $0x1b8] sm:$0xff]
    %v133 = vld [vmem:[#allocation5 + $0x1c0] sm:$0xff]
    %v134 = vld [vmem:[#allocation5 + $0x1c8] sm:$0xff]
    %v135 = vld [vmem:[#allocation5 + $0x1d0] sm:$0xff]
    %v136 = vld [vmem:[#allocation5 + $0x1d8] sm:$0xff]
    %v137 = vld [vmem:[#allocation5 + $0x1e0] sm:$0xff]
    %v138 = vld [vmem:[#allocation5 + $0x1e8] sm:$0xff]
    %v139 = vld [vmem:[#allocation5 + $0x1f0] sm:$0xff]
    %v140 = vld [vmem:[#allocation5 + $0x1f8] sm:$0xff]
    %v141 = vld [vmem:[#allocation7] ss:$2 sm:$0xf]
    %v143 = vlaneseq
    %v144 = vshrl.u32 %v143, 7
    %v145 = vsub.s32 0, %v144
    %v146 = vrot.slane %v141, %v145
    %v147 = vlaneseq
    %v148 = vshrl.u32 %v147, 7
    %v149 = vsub.s32 1, %v148
    %v150 = vrot.slane %v141, %v149
    %v151 = vlaneseq
    %v152 = vshrl.u32 %v151, 7
    %v153 = vsub.s32 2, %v152
    %v154 = vrot.slane %v141, %v153
    %v155 = vlaneseq
    %v156 = vshrl.u32 %v155, 7
    %v157 = vsub.s32 3, %v156
    %v158 = vrot.slane %v141, %v157
    %163 = vmatprep.subr.mxu0 %v138
    %164 = vmatpush1.msra.mxu0 %v137
    %165 = vmatprep.subr.mxu0 %v134
    %166 = vmatpush1.msra.mxu0 %v133
    %167 = vmatprep.subr.mxu0 %v130
    %168 = vmatpush1.msra.mxu0 %v129
    %169 = vmatprep.subr.mxu0 %v126
    %170 = vmatpush1.msra.mxu0 %v125
    %171 = vmatprep.subr.mxu0 %v122
    %172 = vmatpush1.msra.mxu0 %v121
    %173 = vmatprep.subr.mxu0 %v118
    %174 = vmatpush1.msra.mxu0 %v117
    %175 = vmatprep.subr.mxu0 %v114
    %176 = vmatpush1.msra.mxu0 %v113
    %177 = vmatprep.subr.mxu0 %v110
    %178 = vmatpush1.msra.mxu0 %v109
    %179 = vmatprep.subr.mxu0 %v106
    %180 = vmatpush1.msra.mxu0 %v105
    %181 = vmatprep.subr.mxu0 %v102
    %182 = vmatpush1.msra.mxu0 %v101
    %183 = vmatprep.subr.mxu0 %v98
    %184 = vmatpush1.msra.mxu0 %v97
    %185 = vmatprep.subr.mxu0 %v94
    %186 = vmatpush1.msra.mxu0 %v93
    %187 = vmatprep.subr.mxu0 %v90
    %188 = vmatpush1.msra.mxu0 %v89
    %189 = vmatprep.subr.mxu0 %v86
    %190 = vmatpush1.msra.mxu0 %v85
    %191 = vmatprep.subr.mxu0 %v82
    %192 = vmatpush1.msra.mxu0 %v81
    %193 = vmatprep.subr.mxu0 %v78
    %194 = vmatpush1.msra.mxu0 %v77
    %195 = vmatprep.subr.mxu0 0.0
    %196 = vmatpush2.msra.mxu0 0.0
    %197 = vmatprep.subr.mxu0 0.0
    %198 = vmatpush2.msra.mxu0 0.0
    %199 = vmatprep.subr.mxu0 0.0
    %200 = vmatpush2.msra.mxu0 0.0
    %201 = vmatprep.subr.mxu0 0.0
    %202 = vmatpush2.msra.mxu0 0.0
    %203 = vmatprep.subr.mxu0 0.0
    %204 = vmatpush2.msra.mxu0 0.0
    %205 = vmatprep.subr.mxu0 0.0
    %206 = vmatpush2.msra.mxu0 0.0
    %207 = vmatprep.subr.mxu0 0.0
    %208 = vmatpush2.msra.mxu0 0.0
    %209 = vmatprep.subr.mxu0 0.0
    %210 = vmatpush2.msra.mxu0 0.0
    %211 = vmatprep.subr.mxu0 0.0
    %212 = vmatpush2.msra.mxu0 0.0
    %213 = vmatprep.subr.mxu0 0.0
    %214 = vmatpush2.msra.mxu0 0.0
    %215 = vmatprep.subr.mxu0 0.0
    %216 = vmatpush2.msra.mxu0 0.0
    %217 = vmatprep.subr.mxu0 0.0
    %218 = vmatpush2.msra.mxu0 0.0
    %219 = vmatprep.subr.mxu0 0.0
    %220 = vmatpush2.msra.mxu0 0.0
    %221 = vmatprep.subr.mxu0 0.0
    %222 = vmatpush2.msra.mxu0 0.0
    %223 = vmatprep.subr.mxu0 0.0
    %224 = vmatpush2.msra.mxu0 0.0
    %225 = vmatprep.subr.mxu0 0.0
    %226 = vmatpush2.msra.mxu0 0.0
    %227 = vmatprep.mubr.f32.mxu0 0.0
    %228 = vmatmul.mubr.f32.gmra.mxu0 %v74
    %v229 = vpop.f32.mrf.mxu0
    %v230 = vadd.f32 %v146, %v229
    %v231 = vpop.f32.mrf.mxu0
    %v232 = vadd.f32 %v150, %v231
    %233 = vmatprep.mubr.f32.mxu0 0.0
    %234 = vmatmul.mubr.f32.gmra.mxu0 %v75
    %v235 = vpop.f32.mrf.mxu0
    %v236 = vadd.f32 %v146, %v235
    %v237 = vpop.f32.mrf.mxu0
    %v238 = vadd.f32 %v150, %v237
    %239 = vmatprep.mubr.f32.mxu0 0.0
    %240 = vmatmul.mubr.f32.gmra.mxu0 %v76
    %v241 = vpop.f32.mrf.mxu0
    %v242 = vadd.f32 %v146, %v241
    %v243 = vpop.f32.mrf.mxu0
    %v244 = vadd.f32 %v150, %v243
    %245 = vdwg.mxu0
    %246 = vmatprep.subr.mxu0 %v140
    %247 = vmatpush1.msra.mxu0 %v139
    %248 = vmatprep.subr.mxu0 %v136
    %249 = vmatpush1.msra.mxu0 %v135
    %250 = vmatprep.subr.mxu0 %v132
    %251 = vmatpush1.msra.mxu0 %v131
    %252 = vmatprep.subr.mxu0 %v128
    %253 = vmatpush1.msra.mxu0 %v127
    %254 = vmatprep.subr.mxu0 %v124
    %255 = vmatpush1.msra.mxu0 %v123
    %256 = vmatprep.subr.mxu0 %v120
    %257 = vmatpush1.msra.mxu0 %v119
    %258 = vmatprep.subr.mxu0 %v116
    %259 = vmatpush1.msra.mxu0 %v115
    %260 = vmatprep.subr.mxu0 %v112
    %261 = vmatpush1.msra.mxu0 %v111
    %262 = vmatprep.subr.mxu0 %v108
    %263 = vmatpush1.msra.mxu0 %v107
    %264 = vmatprep.subr.mxu0 %v104
    %265 = vmatpush1.msra.mxu0 %v103
    %266 = vmatprep.subr.mxu0 %v100
    %267 = vmatpush1.msra.mxu0 %v99
    %268 = vmatprep.subr.mxu0 %v96
    %269 = vmatpush1.msra.mxu0 %v95
    %270 = vmatprep.subr.mxu0 %v92
    %271 = vmatpush1.msra.mxu0 %v91
    %272 = vmatprep.subr.mxu0 %v88
    %273 = vmatpush1.msra.mxu0 %v87
    %274 = vmatprep.subr.mxu0 %v84
    %275 = vmatpush1.msra.mxu0 %v83
    %276 = vmatprep.subr.mxu0 %v80
    %277 = vmatpush1.msra.mxu0 %v79
    %278 = vmatprep.subr.mxu0 0.0
    %279 = vmatpush2.msra.mxu0 0.0
    %280 = vmatprep.subr.mxu0 0.0
    %281 = vmatpush2.msra.mxu0 0.0
    %282 = vmatprep.subr.mxu0 0.0
    %283 = vmatpush2.msra.mxu0 0.0
    %284 = vmatprep.subr.mxu0 0.0
    %285 = vmatpush2.msra.mxu0 0.0
    %286 = vmatprep.subr.mxu0 0.0
    %287 = vmatpush2.msra.mxu0 0.0
    %288 = vmatprep.subr.mxu0 0.0
    %289 = vmatpush2.msra.mxu0 0.0
    %290 = vmatprep.subr.mxu0 0.0
    %291 = vmatpush2.msra.mxu0 0.0
    %292 = vmatprep.subr.mxu0 0.0
    %293 = vmatpush2.msra.mxu0 0.0
    %294 = vmatprep.subr.mxu0 0.0
    %295 = vmatpush2.msra.mxu0 0.0
    %296 = vmatprep.subr.mxu0 0.0
    %297 = vmatpush2.msra.mxu0 0.0
    %298 = vmatprep.subr.mxu0 0.0
    %299 = vmatpush2.msra.mxu0 0.0
    %300 = vmatprep.subr.mxu0 0.0
    %301 = vmatpush2.msra.mxu0 0.0
    %302 = vmatprep.subr.mxu0 0.0
    %303 = vmatpush2.msra.mxu0 0.0
    %304 = vmatprep.subr.mxu0 0.0
    %305 = vmatpush2.msra.mxu0 0.0
    %306 = vmatprep.subr.mxu0 0.0
    %307 = vmatpush2.msra.mxu0 0.0
    %308 = vmatprep.subr.mxu0 0.0
    %309 = vmatpush2.msra.mxu0 0.0
    %310 = vmatprep.mubr.f32.mxu0 0.0
    %311 = vmatmul.mubr.f32.gmra.mxu0 %v74
    %v312 = vpop.f32.mrf.mxu0
    %v313 = vadd.f32 %v154, %v312
    %v314 = vpop.f32.mrf.mxu0
    %v315 = vadd.f32 %v158, %v314
    %316 = vmatprep.mubr.f32.mxu0 0.0
    %317 = vmatmul.mubr.f32.gmra.mxu0 %v75
    %v318 = vpop.f32.mrf.mxu0
    %v319 = vadd.f32 %v154, %v318
    %v320 = vpop.f32.mrf.mxu0
    %v321 = vadd.f32 %v158, %v320
    %322 = vmatprep.mubr.f32.mxu0 0.0
    %323 = vmatmul.mubr.f32.gmra.mxu0 %v76
    %v324 = vpop.f32.mrf.mxu0
    %v325 = vadd.f32 %v154, %v324
    %v326 = vpop.f32.mrf.mxu0
    %v327 = vadd.f32 %v158, %v326
    %328 = vdwg.mxu0
    %s329 = scalar_lea.vmem [#allocation7], 1
    %v330 = vld [vmem:[%s329] ss:$2 sm:$0xf]
    %v332 = vlaneseq
    %v333 = vshrl.u32 %v332, 7
    %v334 = vsub.s32 0, %v333
    %v335 = vrot.slane %v330, %v334
    %v336 = vlaneseq
    %v337 = vshrl.u32 %v336, 7
    %v338 = vsub.s32 1, %v337
    %v339 = vrot.slane %v330, %v338
    %v340 = vlaneseq
    %v341 = vshrl.u32 %v340, 7
    %v342 = vsub.s32 2, %v341
    %v343 = vrot.slane %v330, %v342
    %v344 = vlaneseq
    %v345 = vshrl.u32 %v344, 7
    %v346 = vsub.s32 3, %v345
    %v347 = vrot.slane %v330, %v346
    %vm352 = vcmp.gt.f32.partialorder %v230, %v335
    %vm353 = vcmp.gt.f32.partialorder %v232, %v339
    %vm354 = vcmp.gt.f32.partialorder %v313, %v343
    %vm355 = vcmp.gt.f32.partialorder %v315, %v347
    %vm356 = vcmp.gt.f32.partialorder %v236, %v335
    %vm357 = vcmp.gt.f32.partialorder %v238, %v339
    %vm358 = vcmp.gt.f32.partialorder %v319, %v343
    %vm359 = vcmp.gt.f32.partialorder %v321, %v347
    %vm360 = vcmp.gt.f32.partialorder %v242, %v335
    %vm361 = vcmp.gt.f32.partialorder %v244, %v339
    %vm362 = vcmp.gt.f32.partialorder %v325, %v343
    %vm363 = vcmp.gt.f32.partialorder %v327, %v347
    %v364 = vsel %vm352, %v230, 0.0
    %v365 = vsel %vm353, %v232, 0.0
    %v366 = vsel %vm354, %v313, 0.0
    %v367 = vsel %vm355, %v315, 0.0
    %v368 = vsel %vm356, %v236, 0.0
    %v369 = vsel %vm357, %v238, 0.0
    %v370 = vsel %vm358, %v319, 0.0
    %v371 = vsel %vm359, %v321, 0.0
    %v372 = vsel %vm360, %v242, 0.0
    %v373 = vsel %vm361, %v244, 0.0
    %v374 = vsel %vm362, %v325, 0.0
    %v375 = vsel %vm363, %v327, 0.0
    %v376 = vld [vmem:[#allocation8] sm:$0xff]
    %v377 = vld [vmem:[#allocation8 + $0x8] sm:$0xff]
    %v378 = vld [vmem:[#allocation8 + $0x10] sm:$0xff]
    %v379 = vld [vmem:[#allocation8 + $0x18] sm:$0xff]
    %v380 = vld [vmem:[#allocation8 + $0x20] sm:$0xff]
    %v381 = vld [vmem:[#allocation8 + $0x28] sm:$0xff]
    %v382 = vld [vmem:[#allocation8 + $0x30] sm:$0xff]
    %v383 = vld [vmem:[#allocation8 + $0x38] sm:$0xff]
    %v384 = vld [vmem:[#allocation8 + $0x40] sm:$0xff]
    %v385 = vld [vmem:[#allocation8 + $0x48] sm:$0xff]
    %v386 = vld [vmem:[#allocation8 + $0x50] sm:$0xff]
    %v387 = vld [vmem:[#allocation8 + $0x58] sm:$0xff]
    %v388 = vld [vmem:[#allocation8 + $0x60] sm:$0xff]
    %v389 = vld [vmem:[#allocation8 + $0x68] sm:$0xff]
    %v390 = vld [vmem:[#allocation8 + $0x70] sm:$0xff]
    %v391 = vld [vmem:[#allocation8 + $0x78] sm:$0xff]
    %v392 = vld [vmem:[#allocation8 + $0x80] sm:$0xff]
    %v393 = vld [vmem:[#allocation8 + $0x88] sm:$0xff]
    %v394 = vld [vmem:[#allocation8 + $0x90] sm:$0xff]
    %v395 = vld [vmem:[#allocation8 + $0x98] sm:$0xff]
    %v396 = vld [vmem:[#allocation8 + $0xa0] sm:$0xff]
    %v397 = vld [vmem:[#allocation8 + $0xa8] sm:$0xff]
    %v398 = vld [vmem:[#allocation8 + $0xb0] sm:$0xff]
    %v399 = vld [vmem:[#allocation8 + $0xb8] sm:$0xff]
    %v400 = vld [vmem:[#allocation8 + $0xc0] sm:$0xff]
    %v401 = vld [vmem:[#allocation8 + $0xc8] sm:$0xff]
    %v402 = vld [vmem:[#allocation8 + $0xd0] sm:$0xff]
    %v403 = vld [vmem:[#allocation8 + $0xd8] sm:$0xff]
    %v404 = vld [vmem:[#allocation8 + $0xe0] sm:$0xff]
    %v405 = vld [vmem:[#allocation8 + $0xe8] sm:$0xff]
    %v406 = vld [vmem:[#allocation8 + $0xf0] sm:$0xff]
    %v407 = vld [vmem:[#allocation8 + $0xf8] sm:$0xff]
    %v408 = vld [vmem:[#allocation8 + $0x100] sm:$0xff]
    %v409 = vld [vmem:[#allocation8 + $0x108] sm:$0xff]
    %v410 = vld [vmem:[#allocation8 + $0x110] sm:$0xff]
    %v411 = vld [vmem:[#allocation8 + $0x118] sm:$0xff]
    %v412 = vld [vmem:[#allocation8 + $0x120] sm:$0xff]
    %v413 = vld [vmem:[#allocation8 + $0x128] sm:$0xff]
    %v414 = vld [vmem:[#allocation8 + $0x130] sm:$0xff]
    %v415 = vld [vmem:[#allocation8 + $0x138] sm:$0xff]
    %v416 = vld [vmem:[#allocation8 + $0x140] sm:$0xff]
    %v417 = vld [vmem:[#allocation8 + $0x148] sm:$0xff]
    %v418 = vld [vmem:[#allocation8 + $0x150] sm:$0xff]
    %v419 = vld [vmem:[#allocation8 + $0x158] sm:$0xff]
    %v420 = vld [vmem:[#allocation8 + $0x160] sm:$0xff]
    %v421 = vld [vmem:[#allocation8 + $0x168] sm:$0xff]
    %v422 = vld [vmem:[#allocation8 + $0x170] sm:$0xff]
    %v423 = vld [vmem:[#allocation8 + $0x178] sm:$0xff]
    %v424 = vld [vmem:[#allocation8 + $0x180] sm:$0xff]
    %v425 = vld [vmem:[#allocation8 + $0x188] sm:$0xff]
    %v426 = vld [vmem:[#allocation8 + $0x190] sm:$0xff]
    %v427 = vld [vmem:[#allocation8 + $0x198] sm:$0xff]
    %v428 = vld [vmem:[#allocation8 + $0x1a0] sm:$0xff]
    %v429 = vld [vmem:[#allocation8 + $0x1a8] sm:$0xff]
    %v430 = vld [vmem:[#allocation8 + $0x1b0] sm:$0xff]
    %v431 = vld [vmem:[#allocation8 + $0x1b8] sm:$0xff]
    %v432 = vld [vmem:[#allocation8 + $0x1c0] sm:$0xff]
    %v433 = vld [vmem:[#allocation8 + $0x1c8] sm:$0xff]
    %v434 = vld [vmem:[#allocation8 + $0x1d0] sm:$0xff]
    %v435 = vld [vmem:[#allocation8 + $0x1d8] sm:$0xff]
    %v436 = vld [vmem:[#allocation8 + $0x1e0] sm:$0xff]
    %v437 = vld [vmem:[#allocation8 + $0x1e8] sm:$0xff]
    %v438 = vld [vmem:[#allocation8 + $0x1f0] sm:$0xff]
    %v439 = vld [vmem:[#allocation8 + $0x1f8] sm:$0xff]
    %v440 = vld [vmem:[%s4] sm:$0x1]
    %v442 = vlaneseq
    %v443 = vshrl.u32 %v442, 7
    %v444 = vsub.s32 0, %v443
    %v445 = vrot.slane %v440, %v444
    %447 = vmatprep.subr.mxu0 0.0
    %448 = vmatpush1.msra.mxu0 %v391
    %449 = vmatprep.subr.mxu0 0.0
    %450 = vmatpush1.msra.mxu0 %v390
    %451 = vmatprep.subr.mxu0 0.0
    %452 = vmatpush1.msra.mxu0 %v389
    %453 = vmatprep.subr.mxu0 0.0
    %454 = vmatpush1.msra.mxu0 %v388
    %455 = vmatprep.subr.mxu0 0.0
    %456 = vmatpush1.msra.mxu0 %v387
    %457 = vmatprep.subr.mxu0 0.0
    %458 = vmatpush1.msra.mxu0 %v386
    %459 = vmatprep.subr.mxu0 0.0
    %460 = vmatpush1.msra.mxu0 %v385
    %461 = vmatprep.subr.mxu0 0.0
    %462 = vmatpush1.msra.mxu0 %v384
    %463 = vmatprep.subr.mxu0 0.0
    %464 = vmatpush1.msra.mxu0 %v383
    %465 = vmatprep.subr.mxu0 0.0
    %466 = vmatpush1.msra.mxu0 %v382
    %467 = vmatprep.subr.mxu0 0.0
    %468 = vmatpush1.msra.mxu0 %v381
    %469 = vmatprep.subr.mxu0 0.0
    %470 = vmatpush1.msra.mxu0 %v380
    %471 = vmatprep.subr.mxu0 0.0
    %472 = vmatpush1.msra.mxu0 %v379
    %473 = vmatprep.subr.mxu0 0.0
    %474 = vmatpush1.msra.mxu0 %v378
    %475 = vmatprep.subr.mxu0 0.0
    %476 = vmatpush1.msra.mxu0 %v377
    %477 = vmatprep.subr.mxu0 0.0
    %478 = vmatpush1.msra.mxu0 %v376
    %479 = vmatprep.subr.mxu0 0.0
    %480 = vmatpush2.msra.mxu0 %v407
    %481 = vmatprep.subr.mxu0 0.0
    %482 = vmatpush2.msra.mxu0 %v406
    %483 = vmatprep.subr.mxu0 0.0
    %484 = vmatpush2.msra.mxu0 %v405
    %485 = vmatprep.subr.mxu0 0.0
    %486 = vmatpush2.msra.mxu0 %v404
    %487 = vmatprep.subr.mxu0 0.0
    %488 = vmatpush2.msra.mxu0 %v403
    %489 = vmatprep.subr.mxu0 0.0
    %490 = vmatpush2.msra.mxu0 %v402
    %491 = vmatprep.subr.mxu0 0.0
    %492 = vmatpush2.msra.mxu0 %v401
    %493 = vmatprep.subr.mxu0 0.0
    %494 = vmatpush2.msra.mxu0 %v400
    %495 = vmatprep.subr.mxu0 0.0
    %496 = vmatpush2.msra.mxu0 %v399
    %497 = vmatprep.subr.mxu0 0.0
    %498 = vmatpush2.msra.mxu0 %v398
    %499 = vmatprep.subr.mxu0 0.0
    %500 = vmatpush2.msra.mxu0 %v397
    %501 = vmatprep.subr.mxu0 0.0
    %502 = vmatpush2.msra.mxu0 %v396
    %503 = vmatprep.subr.mxu0 0.0
    %504 = vmatpush2.msra.mxu0 %v395
    %505 = vmatprep.subr.mxu0 0.0
    %506 = vmatpush2.msra.mxu0 %v394
    %507 = vmatprep.subr.mxu0 0.0
    %508 = vmatpush2.msra.mxu0 %v393
    %509 = vmatprep.subr.mxu0 0.0
    %510 = vmatpush2.msra.mxu0 %v392
    %511 = vmatprep.mubr.f32.mxu0 %v365
    %512 = vmatmul.mubr.f32.gmra.mxu0 %v364
    %v513 = vpop.f32.mrf.mxu0
    %v514 = vadd.f32 %v445, %v513
    %v515 = vpop.f32.mrf.mxu0
    %516 = vmatprep.mubr.f32.mxu0 %v369
    %517 = vmatmul.mubr.f32.gmra.mxu0 %v368
    %v518 = vpop.f32.mrf.mxu0
    %v519 = vadd.f32 %v445, %v518
    %v520 = vpop.f32.mrf.mxu0
    %521 = vmatprep.mubr.f32.mxu0 %v373
    %522 = vmatmul.mubr.f32.gmra.mxu0 %v372
    %v523 = vpop.f32.mrf.mxu0
    %v524 = vadd.f32 %v445, %v523
    %v525 = vpop.f32.mrf.mxu0
    %526 = vdwg.mxu0
    %527 = vmatprep.subr.mxu0 0.0
    %528 = vmatpush1.msra.mxu0 %v423
    %529 = vmatprep.subr.mxu0 0.0
    %530 = vmatpush1.msra.mxu0 %v422
    %531 = vmatprep.subr.mxu0 0.0
    %532 = vmatpush1.msra.mxu0 %v421
    %533 = vmatprep.subr.mxu0 0.0
    %534 = vmatpush1.msra.mxu0 %v420
    %535 = vmatprep.subr.mxu0 0.0
    %536 = vmatpush1.msra.mxu0 %v419
    %537 = vmatprep.subr.mxu0 0.0
    %538 = vmatpush1.msra.mxu0 %v418
    %539 = vmatprep.subr.mxu0 0.0
    %540 = vmatpush1.msra.mxu0 %v417
    %541 = vmatprep.subr.mxu0 0.0
    %542 = vmatpush1.msra.mxu0 %v416
    %543 = vmatprep.subr.mxu0 0.0
    %544 = vmatpush1.msra.mxu0 %v415
    %545 = vmatprep.subr.mxu0 0.0
    %546 = vmatpush1.msra.mxu0 %v414
    %547 = vmatprep.subr.mxu0 0.0
    %548 = vmatpush1.msra.mxu0 %v413
    %549 = vmatprep.subr.mxu0 0.0
    %550 = vmatpush1.msra.mxu0 %v412
    %551 = vmatprep.subr.mxu0 0.0
    %552 = vmatpush1.msra.mxu0 %v411
    %553 = vmatprep.subr.mxu0 0.0
    %554 = vmatpush1.msra.mxu0 %v410
    %555 = vmatprep.subr.mxu0 0.0
    %556 = vmatpush1.msra.mxu0 %v409
    %557 = vmatprep.subr.mxu0 0.0
    %558 = vmatpush1.msra.mxu0 %v408
    %559 = vmatprep.subr.mxu0 0.0
    %560 = vmatpush2.msra.mxu0 %v439
    %561 = vmatprep.subr.mxu0 0.0
    %562 = vmatpush2.msra.mxu0 %v438
    %563 = vmatprep.subr.mxu0 0.0
    %564 = vmatpush2.msra.mxu0 %v437
    %565 = vmatprep.subr.mxu0 0.0
    %566 = vmatpush2.msra.mxu0 %v436
    %567 = vmatprep.subr.mxu0 0.0
    %568 = vmatpush2.msra.mxu0 %v435
    %569 = vmatprep.subr.mxu0 0.0
    %570 = vmatpush2.msra.mxu0 %v434
    %571 = vmatprep.subr.mxu0 0.0
    %572 = vmatpush2.msra.mxu0 %v433
    %573 = vmatprep.subr.mxu0 0.0
    %574 = vmatpush2.msra.mxu0 %v432
    %575 = vmatprep.subr.mxu0 0.0
    %576 = vmatpush2.msra.mxu0 %v431
    %577 = vmatprep.subr.mxu0 0.0
    %578 = vmatpush2.msra.mxu0 %v430
    %579 = vmatprep.subr.mxu0 0.0
    %580 = vmatpush2.msra.mxu0 %v429
    %581 = vmatprep.subr.mxu0 0.0
    %582 = vmatpush2.msra.mxu0 %v428
    %583 = vmatprep.subr.mxu0 0.0
    %584 = vmatpush2.msra.mxu0 %v427
    %585 = vmatprep.subr.mxu0 0.0
    %586 = vmatpush2.msra.mxu0 %v426
    %587 = vmatprep.subr.mxu0 0.0
    %588 = vmatpush2.msra.mxu0 %v425
    %589 = vmatprep.subr.mxu0 0.0
    %590 = vmatpush2.msra.mxu0 %v424
    %591 = vmatprep.mubr.f32.mxu0 %v367
    %592 = vmatmul.mubr.f32.gmra.mxu0 %v366
    %v593 = vpop.f32.mrf.mxu0
    %v594 = vadd.f32 %v514, %v593
    %v595 = vpop.f32.mrf.mxu0
    %596 = vmatprep.mubr.f32.mxu0 %v371
    %597 = vmatmul.mubr.f32.gmra.mxu0 %v370
    %v598 = vpop.f32.mrf.mxu0
    %v599 = vadd.f32 %v519, %v598
    %v600 = vpop.f32.mrf.mxu0
    %601 = vmatprep.mubr.f32.mxu0 %v375
    %602 = vmatmul.mubr.f32.gmra.mxu0 %v374
    %v603 = vpop.f32.mrf.mxu0
    %v604 = vadd.f32 %v524, %v603
    %v605 = vpop.f32.mrf.mxu0
    %606 = vdwg.mxu0
    %607 = vst [vmem:[#allocation10] sm:$0xff] %v594
    %608 = vst [vmem:[#allocation10 + $0x8] sm:$0xff] %v599
    %609 = vst [vmem:[#allocation10 + $0x10] sm:$0xff] %v604
    // Predicated region
    $region38: #{tpu_custom_call.1} parent=1 // pred_check
      _
    $region39: #{tpu_custom_call.1} parent=1 // pred_check_branch
      %611 = sbr.rel (0) target = $region41
    $region40: #{tpu_custom_call.1} parent=1 // pred_region
      %s613 = ssub.s32 384, 384
      %614 = vsyncadd [#allocation4], %s613
      %s615 = sshll.u32 [#allocation10], 4
      %s616 = int_to_ptr.vmem [resolvable:$true] %s615
      %621 = dma.vmem_to_hbm [thread:$0]  %s616, 384, %s5, [#allocation4], 128, 128, 8
    $region41: #{tpu_custom_call.1} parent=1 // pred_fallthru
      _
    // Predicated region
    $region42: #{tpu_custom_call.1} parent=1 // pred_check
      _
    $region43: #{tpu_custom_call.1} parent=1 // pred_check_branch
      %623 = sbr.rel (0) target = $region45
    $region44: #{tpu_custom_call.1} parent=1 // pred_region
      %624 = dma.done [#allocation4], 384
    $region45: #{tpu_custom_call.1} parent=1 // pred_fallthru
      _
    %625 = vsyncpa [#allocation3], 1
    %626 = vsyncpa [#allocation6], 1
    %627 = vsyncpa [#allocation9], 1
    %628 = vsyncpa [#allocation4], 1

</llo_original>
